<compile_context>
chip_gen: v5e
topology: v5e:2x2
jax: 0.10.0
libtpu: 0.0.40
codegen_flags: <defaults>
</compile_context>

<pallas_src>
import jax
import jax.numpy as jnp
from jax.experimental import pallas as pl
from jax.experimental.pallas import tpu as pltpu

# ----------------------------- model dims -----------------------------------
OBS_DIM = 16
ACT_DIM = 8
HID = 32                      # imitation default hid_sizes=(32, 32)
EPS = 1e-5                    # RunningNorm eps
COMPUTE_DTYPE = jnp.bfloat16  # matmul operand dtype (accumulation is f32)
MAX_TB = 1024                 # batch tile (rows) upper bound


def _round_up(x: int, m: int) -> int:
    return -(-x // m) * m


# ----------------------------- Pallas kernel --------------------------------
def reward_kernel(s_ref, a_ref, ns_ref, d_ref,
                  w1s_ref, w1a_ref, w1n_ref, w1d_ref, b1_ref,
                  w2_ref, b2_ref, w3f_ref, b3f_ref, out_ref):
    # Layer 1: x @ W1 expressed as per-input matmuls (concat done "virtually"
    # by splitting W1's rows) -> no concatenated (B, 41) array through HBM.
    h1 = jnp.dot(s_ref[...], w1s_ref[...], preferred_element_type=jnp.float32)
    h1 = h1 + jnp.dot(a_ref[...], w1a_ref[...], preferred_element_type=jnp.float32)
    h1 = h1 + jnp.dot(ns_ref[...], w1n_ref[...], preferred_element_type=jnp.float32)
    # done contribution: rank-1 broadcast multiply on the VPU, kept in f32.
    h1 = h1 + d_ref[...] * w1d_ref[...]
    h1 = jnp.maximum(h1 + b1_ref[...], 0.0)          # bias + ReLU in f32

    # Layer 2
    h2 = jnp.dot(h1.astype(w2_ref.dtype), w2_ref[...],
                 preferred_element_type=jnp.float32)
    h2 = jnp.maximum(h2 + b2_ref[...], 0.0)

    # Layer 3 with RunningNorm folded in:
    #   out[:, 0] = raw base reward (forward())
    #   out[:, 1] = (raw - mean) / sqrt(var + eps)
    out = jnp.dot(h2.astype(w3f_ref.dtype), w3f_ref[...],
                  preferred_element_type=jnp.float32)
    out_ref[...] = out + b3f_ref[...]


# ----------------------------- param preparation -----------------------------
def prepare_params(params, compute_dtype=COMPUTE_DTYPE):
    """Split W1 by input, fold RunningNorm into the last layer, cast matmul weights."""
    inv = 1.0 / jnp.sqrt(params["run_var"] + EPS)                 # (1, 1)
    w3, b3 = params["w3"], params["b3"]                           # (HID,1), (1,1)
    w3f = jnp.concatenate([w3, w3 * inv], axis=1)                 # (HID, 2)
    b3f = jnp.concatenate([b3, (b3 - params["run_mean"]) * inv], axis=1)  # (1, 2)

    w1 = params["w1"]  # (OBS+ACT+OBS+1, HID)
    o, a = OBS_DIM, ACT_DIM
    return {
        "w1s": w1[:o].astype(compute_dtype),
        "w1a": w1[o:o + a].astype(compute_dtype),
        "w1n": w1[o + a:o + a + o].astype(compute_dtype),
        "w1d": w1[o + a + o:].astype(jnp.float32),   # (1, HID), used as f32 broadcast
        "b1": params["b1"].astype(jnp.float32),
        "w2": params["w2"].astype(compute_dtype),
        "b2": params["b2"].astype(jnp.float32),
        "w3f": w3f.astype(compute_dtype),
        "b3f": b3f.astype(jnp.float32),
    }


# ----------------------------- wrapper ---------------------------------------
def normalized_reward_net(state, action, next_state, done, params,
                          compute_dtype=COMPUTE_DTYPE):
    """Fused base-MLP + RunningNorm. Returns (reward, normalized_reward), each (B,)."""
    pp = prepare_params(params, compute_dtype)

    B = state.shape[0]
    TB = min(MAX_TB, _round_up(B, 8))
    B_pad = _round_up(B, TB)

    s = state.astype(compute_dtype)
    a = action.astype(compute_dtype)
    ns = next_state.astype(compute_dtype)
    d = done.reshape(B, 1).astype(jnp.float32)

    if B_pad != B:
        pad = B_pad - B
        s = jnp.pad(s, ((0, pad), (0, 0)))
        a = jnp.pad(a, ((0, pad), (0, 0)))
        ns = jnp.pad(ns, ((0, pad), (0, 0)))
        d = jnp.pad(d, ((0, pad), (0, 0)))

    batch_spec = lambda feat: pl.BlockSpec((TB, feat), lambda i: (i, 0))
    const_spec = lambda shape: pl.BlockSpec(shape, lambda i: (0, 0))

    grid_spec = pltpu.PrefetchScalarGridSpec(
        num_scalar_prefetch=0,
        grid=(B_pad // TB,),
        in_specs=[
            batch_spec(OBS_DIM),          # state
            batch_spec(ACT_DIM),          # action
            batch_spec(OBS_DIM),          # next_state
            batch_spec(1),                # done
            const_spec((OBS_DIM, HID)),   # w1s
            const_spec((ACT_DIM, HID)),   # w1a
            const_spec((OBS_DIM, HID)),   # w1n
            const_spec((1, HID)),         # w1d
            const_spec((1, HID)),         # b1
            const_spec((HID, HID)),       # w2
            const_spec((1, HID)),         # b2
            const_spec((HID, 2)),         # w3 | w3*inv
            const_spec((1, 2)),           # b3 | (b3-mean)*inv
        ],
        out_specs=pl.BlockSpec((TB, 2), lambda i: (i, 0)),
    )

    out = pl.pallas_call(
        reward_kernel,
        out_shape=jax.ShapeDtypeStruct((B_pad, 2), jnp.float32),
        grid_spec=grid_spec,
        compiler_params=pltpu.CompilerParams(
            dimension_semantics=("parallel",)),
    )(s, a, ns, d,
      pp["w1s"], pp["w1a"], pp["w1n"], pp["w1d"], pp["b1"],
      pp["w2"], pp["b2"], pp["w3f"], pp["b3f"])

    # SqueezeLayer semantics -> (B,)
    return out[:B, 0], out[:B, 1]


# ----------------------------- reference (pure JAX) --------------------------
def reference(state, action, next_state, done, params,
              compute_dtype=COMPUTE_DTYPE):
    """Same math (same folding / casts) in plain JAX, for verification."""
    pp = prepare_params(params, compute_dtype)
    B = state.shape[0]
    s = state.astype(compute_dtype)
    a = action.astype(compute_dtype)
    ns = next_state.astype(compute_dtype)
    d = done.reshape(B, 1).astype(jnp.float32)

    h1 = (jnp.dot(s, pp["w1s"], preferred_element_type=jnp.float32)
          + jnp.dot(a, pp["w1a"], preferred_element_type=jnp.float32)
          + jnp.dot(ns, pp["w1n"], preferred_element_type=jnp.float32)
          + d * pp["w1d"])
    h1 = jnp.maximum(h1 + pp["b1"], 0.0)
    h2 = jnp.maximum(
        jnp.dot(h1.astype(compute_dtype), pp["w2"],
                preferred_element_type=jnp.float32) + pp["b2"], 0.0)
    out = jnp.dot(h2.astype(compute_dtype), pp["w3f"],
                  preferred_element_type=jnp.float32) + pp["b3f"]
    return out[:, 0], out[:, 1]


# ----------------------------- param init -----------------------------------
def init_params(key):
    k1, k2, k3 = jax.random.split(key, 3)

    def glorot(k, shape):
        fan_in, fan_out = shape
        lim = (6.0 / (fan_in + fan_out)) ** 0.5
        return jax.random.uniform(k, shape, jnp.float32, -lim, lim)

    d_in = OBS_DIM + ACT_DIM + OBS_DIM + 1
    return {
        "w1": glorot(k1, (d_in, HID)),
        "b1": jnp.zeros((1, HID), jnp.float32),
        "w2": glorot(k2, (HID, HID)),
        "b2": jnp.zeros((1, HID), jnp.float32),
        "w3": glorot(k3, (HID, 1)),
        "b3": jnp.zeros((1, 1), jnp.float32),
        # RunningNorm(1) initial running statistics (identity normalization).
        "run_mean": jnp.zeros((1, 1), jnp.float32),
        "run_var": jnp.ones((1, 1), jnp.float32),
    }
    # TODO(synk): RunningNorm.update_stats (mutable running-statistics update in
    # predict_processed) is training-time state mutation, not part of forward();
    # not implemented in the kernel.


# ----------------------------- main ------------------------------------------
if __name__ == "__main__":
    key = jax.random.PRNGKey(0)
    kp, ks, ka, kn, kd = jax.random.split(key, 5)

    B = 8
    params = init_params(kp)

    state = jax.random.normal(ks, (B, OBS_DIM), jnp.float32)
    action = jax.random.normal(ka, (B, ACT_DIM), jnp.float32)
    next_state = jax.random.normal(kn, (B, OBS_DIM), jnp.float32)
    done = (jax.random.uniform(kd, (B,)) < 0.2).astype(jnp.float32)

    rew, norm_rew = normalized_reward_net(state, action, next_state, done, params)
    rew = jax.block_until_ready(rew)
    norm_rew = jax.block_until_ready(norm_rew)

    rew_ref, norm_ref = reference(state, action, next_state, done, params)
    assert rew.shape == (B,) and norm_rew.shape == (B,)
    assert jnp.allclose(rew, rew_ref, atol=1e-4, rtol=1e-4)
    assert jnp.allclose(norm_rew, norm_ref, atol=1e-4, rtol=1e-4)

    print("KERNEL_OK")
</pallas_src>

<mosaic_0001>
module attributes {stable_mosaic.version = 11 : i64} {
  func.func @reward_kernel(%arg0: i32, %arg1: memref<8x16xbf16, #tpu.memory_space<vmem>>, %arg2: memref<8x8xbf16, #tpu.memory_space<vmem>>, %arg3: memref<8x16xbf16, #tpu.memory_space<vmem>>, %arg4: memref<8x1xf32, #tpu.memory_space<vmem>>, %arg5: memref<16x32xbf16, #tpu.memory_space<vmem>>, %arg6: memref<8x32xbf16, #tpu.memory_space<vmem>>, %arg7: memref<16x32xbf16, #tpu.memory_space<vmem>>, %arg8: memref<1x32xf32, #tpu.memory_space<vmem>>, %arg9: memref<1x32xf32, #tpu.memory_space<vmem>>, %arg10: memref<32x32xbf16, #tpu.memory_space<vmem>>, %arg11: memref<1x32xf32, #tpu.memory_space<vmem>>, %arg12: memref<32x2xbf16, #tpu.memory_space<vmem>>, %arg13: memref<1x2xf32, #tpu.memory_space<vmem>>, %arg14: memref<8x2xf32, #tpu.memory_space<vmem>>) attributes {dimension_semantics = [#tpu.dimension_semantics<parallel>], iteration_bounds = array<i64: 1>, scalar_prefetch = 0 : i64, scratch_operands = 0 : i64, tpu.core_type = #tpu.core_type<tc>, window_params = [{transform_indices = @transform_0, window_bounds = array<i64: 8, 16>}, {transform_indices = @transform_1, window_bounds = array<i64: 8, 8>}, {transform_indices = @transform_2, window_bounds = array<i64: 8, 16>}, {transform_indices = @transform_3, window_bounds = array<i64: 8, 1>}, {pipeline_mode = #tpu.pipeline_mode<synchronous>, transform_indices = @transform_4, window_bounds = array<i64: 16, 32>}, {pipeline_mode = #tpu.pipeline_mode<synchronous>, transform_indices = @transform_5, window_bounds = array<i64: 8, 32>}, {pipeline_mode = #tpu.pipeline_mode<synchronous>, transform_indices = @transform_6, window_bounds = array<i64: 16, 32>}, {pipeline_mode = #tpu.pipeline_mode<synchronous>, transform_indices = @transform_7, window_bounds = array<i64: 1, 32>}, {pipeline_mode = #tpu.pipeline_mode<synchronous>, transform_indices = @transform_8, window_bounds = array<i64: 1, 32>}, {pipeline_mode = #tpu.pipeline_mode<synchronous>, transform_indices = @transform_9, window_bounds = array<i64: 32, 32>}, {pipeline_mode = #tpu.pipeline_mode<synchronous>, transform_indices = @transform_10, window_bounds = array<i64: 1, 32>}, {pipeline_mode = #tpu.pipeline_mode<synchronous>, transform_indices = @transform_11, window_bounds = array<i64: 32, 2>}, {pipeline_mode = #tpu.pipeline_mode<synchronous>, transform_indices = @transform_12, window_bounds = array<i64: 1, 2>}, {transform_indices = @transform_13, window_bounds = array<i64: 8, 2>}]} {
    %c0 = arith.constant 0 : index
    %c0_0 = arith.constant 0 : index
    %0 = vector.load %arg1[%c0, %c0_0] : memref<8x16xbf16, #tpu.memory_space<vmem>>, vector<8x16xbf16>
    %c0_1 = arith.constant 0 : index
    %c0_2 = arith.constant 0 : index
    %1 = vector.load %arg5[%c0_1, %c0_2] : memref<16x32xbf16, #tpu.memory_space<vmem>>, vector<16x32xbf16>
    %cst = arith.constant dense<0.000000e+00> : vector<8x32xf32>
    %2 = tpu.matmul %0, %1, %cst {dimension_numbers = #tpu.dot_dimension_numbers<[1], [0], [0], [1], [0, 0, 1, 1], [], []>} : vector<8x16xbf16>, vector<16x32xbf16>, vector<8x32xf32> -> vector<8x32xf32>
    %c0_3 = arith.constant 0 : index
    %c0_4 = arith.constant 0 : index
    %3 = vector.load %arg2[%c0_3, %c0_4] : memref<8x8xbf16, #tpu.memory_space<vmem>>, vector<8x8xbf16>
    %c0_5 = arith.constant 0 : index
    %c0_6 = arith.constant 0 : index
    %4 = vector.load %arg6[%c0_5, %c0_6] : memref<8x32xbf16, #tpu.memory_space<vmem>>, vector<8x32xbf16>
    %cst_7 = arith.constant dense<0.000000e+00> : vector<8x32xf32>
    %5 = tpu.matmul %3, %4, %cst_7 {dimension_numbers = #tpu.dot_dimension_numbers<[1], [0], [0], [1], [0, 0, 1, 1], [], []>} : vector<8x8xbf16>, vector<8x32xbf16>, vector<8x32xf32> -> vector<8x32xf32>
    %6 = arith.addf %2, %5 : vector<8x32xf32>
    %c0_8 = arith.constant 0 : index
    %c0_9 = arith.constant 0 : index
    %7 = vector.load %arg3[%c0_8, %c0_9] : memref<8x16xbf16, #tpu.memory_space<vmem>>, vector<8x16xbf16>
    %c0_10 = arith.constant 0 : index
    %c0_11 = arith.constant 0 : index
    %8 = vector.load %arg7[%c0_10, %c0_11] : memref<16x32xbf16, #tpu.memory_space<vmem>>, vector<16x32xbf16>
    %cst_12 = arith.constant dense<0.000000e+00> : vector<8x32xf32>
    %9 = tpu.matmul %7, %8, %cst_12 {dimension_numbers = #tpu.dot_dimension_numbers<[1], [0], [0], [1], [0, 0, 1, 1], [], []>} : vector<8x16xbf16>, vector<16x32xbf16>, vector<8x32xf32> -> vector<8x32xf32>
    %10 = arith.addf %6, %9 : vector<8x32xf32>
    %c0_13 = arith.constant 0 : index
    %c0_14 = arith.constant 0 : index
    %11 = vector.load %arg4[%c0_13, %c0_14] : memref<8x1xf32, #tpu.memory_space<vmem>>, vector<8x1xf32>
    %c0_15 = arith.constant 0 : index
    %c0_16 = arith.constant 0 : index
    %12 = vector.load %arg8[%c0_15, %c0_16] : memref<1x32xf32, #tpu.memory_space<vmem>>, vector<1x32xf32>
    %13 = vector.broadcast %11 : vector<8x1xf32> to vector<8x32xf32>
    %14 = vector.broadcast %12 : vector<1x32xf32> to vector<8x32xf32>
    %15 = arith.mulf %13, %14 : vector<8x32xf32>
    %16 = arith.addf %10, %15 : vector<8x32xf32>
    %c0_17 = arith.constant 0 : index
    %c0_18 = arith.constant 0 : index
    %17 = vector.load %arg9[%c0_17, %c0_18] : memref<1x32xf32, #tpu.memory_space<vmem>>, vector<1x32xf32>
    %18 = vector.broadcast %17 : vector<1x32xf32> to vector<8x32xf32>
    %19 = arith.addf %16, %18 : vector<8x32xf32>
    %cst_19 = arith.constant 0.000000e+00 : f32
    %20 = vector.broadcast %cst_19 : f32 to vector<8x32xf32>
    %21 = arith.maximumf %19, %20 : vector<8x32xf32>
    %22 = arith.truncf %21 : vector<8x32xf32> to vector<8x32xbf16>
    %c0_20 = arith.constant 0 : index
    %c0_21 = arith.constant 0 : index
    %23 = vector.load %arg10[%c0_20, %c0_21] : memref<32x32xbf16, #tpu.memory_space<vmem>>, vector<32x32xbf16>
    %cst_22 = arith.constant dense<0.000000e+00> : vector<8x32xf32>
    %24 = tpu.matmul %22, %23, %cst_22 {dimension_numbers = #tpu.dot_dimension_numbers<[1], [0], [0], [1], [0, 0, 1, 1], [], []>} : vector<8x32xbf16>, vector<32x32xbf16>, vector<8x32xf32> -> vector<8x32xf32>
    %c0_23 = arith.constant 0 : index
    %c0_24 = arith.constant 0 : index
    %25 = vector.load %arg11[%c0_23, %c0_24] : memref<1x32xf32, #tpu.memory_space<vmem>>, vector<1x32xf32>
    %26 = vector.broadcast %25 : vector<1x32xf32> to vector<8x32xf32>
    %27 = arith.addf %24, %26 : vector<8x32xf32>
    %cst_25 = arith.constant 0.000000e+00 : f32
    %28 = vector.broadcast %cst_25 : f32 to vector<8x32xf32>
    %29 = arith.maximumf %27, %28 : vector<8x32xf32>
    %30 = arith.truncf %29 : vector<8x32xf32> to vector<8x32xbf16>
    %c0_26 = arith.constant 0 : index
    %c0_27 = arith.constant 0 : index
    %31 = vector.load %arg12[%c0_26, %c0_27] : memref<32x2xbf16, #tpu.memory_space<vmem>>, vector<32x2xbf16>
    %cst_28 = arith.constant dense<0.000000e+00> : vector<8x2xf32>
    %32 = tpu.matmul %30, %31, %cst_28 {dimension_numbers = #tpu.dot_dimension_numbers<[1], [0], [0], [1], [0, 0, 1, 1], [], []>} : vector<8x32xbf16>, vector<32x2xbf16>, vector<8x2xf32> -> vector<8x2xf32>
    %c0_29 = arith.constant 0 : index
    %c0_30 = arith.constant 0 : index
    %33 = vector.load %arg13[%c0_29, %c0_30] : memref<1x2xf32, #tpu.memory_space<vmem>>, vector<1x2xf32>
    %34 = vector.broadcast %33 : vector<1x2xf32> to vector<8x2xf32>
    %35 = arith.addf %32, %34 : vector<8x2xf32>
    %c0_31 = arith.constant 0 : index
    %c0_32 = arith.constant 0 : index
    %36 = vector.load %arg14[%c0_31, %c0_32] : memref<8x2xf32, #tpu.memory_space<vmem>>, vector<8x2xf32>
    tpu.vector_store %arg14[%c0_31, %c0_32], %35 {strides = array<i32>} : memref<8x2xf32, #tpu.memory_space<vmem>>, vector<8x2xf32>,
    return
  }
  func.func @transform_0(%arg0: i32) -> (i32, i32) {
    %c0_i32 = arith.constant 0 : i32
    %c0_i32_0 = arith.constant 0 : i32
    return %arg0, %c0_i32 : i32, i32
  }
  func.func @transform_1(%arg0: i32) -> (i32, i32) {
    %c0_i32 = arith.constant 0 : i32
    %c0_i32_0 = arith.constant 0 : i32
    return %arg0, %c0_i32 : i32, i32
  }
  func.func @transform_2(%arg0: i32) -> (i32, i32) {
    %c0_i32 = arith.constant 0 : i32
    %c0_i32_0 = arith.constant 0 : i32
    return %arg0, %c0_i32 : i32, i32
  }
  func.func @transform_3(%arg0: i32) -> (i32, i32) {
    %c0_i32 = arith.constant 0 : i32
    %c0_i32_0 = arith.constant 0 : i32
    return %arg0, %c0_i32 : i32, i32
  }
  func.func @transform_4(%arg0: i32) -> (i32, i32) {
    %c0_i32 = arith.constant 0 : i32
    %c0_i32_0 = arith.constant 0 : i32
    %c0_i32_1 = arith.constant 0 : i32
    return %c0_i32, %c0_i32_0 : i32, i32
  }
  func.func @transform_5(%arg0: i32) -> (i32, i32) {
    %c0_i32 = arith.constant 0 : i32
    %c0_i32_0 = arith.constant 0 : i32
    %c0_i32_1 = arith.constant 0 : i32
    return %c0_i32, %c0_i32_0 : i32, i32
  }
  func.func @transform_6(%arg0: i32) -> (i32, i32) {
    %c0_i32 = arith.constant 0 : i32
    %c0_i32_0 = arith.constant 0 : i32
    %c0_i32_1 = arith.constant 0 : i32
    return %c0_i32, %c0_i32_0 : i32, i32
  }
  func.func @transform_7(%arg0: i32) -> (i32, i32) {
    %c0_i32 = arith.constant 0 : i32
    %c0_i32_0 = arith.constant 0 : i32
    %c0_i32_1 = arith.constant 0 : i32
    return %c0_i32, %c0_i32_0 : i32, i32
  }
  func.func @transform_8(%arg0: i32) -> (i32, i32) {
    %c0_i32 = arith.constant 0 : i32
    %c0_i32_0 = arith.constant 0 : i32
    %c0_i32_1 = arith.constant 0 : i32
    return %c0_i32, %c0_i32_0 : i32, i32
  }
  func.func @transform_9(%arg0: i32) -> (i32, i32) {
    %c0_i32 = arith.constant 0 : i32
    %c0_i32_0 = arith.constant 0 : i32
    %c0_i32_1 = arith.constant 0 : i32
    return %c0_i32, %c0_i32_0 : i32, i32
  }
  func.func @transform_10(%arg0: i32) -> (i32, i32) {
    %c0_i32 = arith.constant 0 : i32
    %c0_i32_0 = arith.constant 0 : i32
    %c0_i32_1 = arith.constant 0 : i32
    return %c0_i32, %c0_i32_0 : i32, i32
  }
  func.func @transform_11(%arg0: i32) -> (i32, i32) {
    %c0_i32 = arith.constant 0 : i32
    %c0_i32_0 = arith.constant 0 : i32
    %c0_i32_1 = arith.constant 0 : i32
    return %c0_i32, %c0_i32_0 : i32, i32
  }
  func.func @transform_12(%arg0: i32) -> (i32, i32) {
    %c0_i32 = arith.constant 0 : i32
    %c0_i32_0 = arith.constant 0 : i32
    %c0_i32_1 = arith.constant 0 : i32
    return %c0_i32, %c0_i32_0 : i32, i32
  }
  func.func @transform_13(%arg0: i32) -> (i32, i32) {
    %c0_i32 = arith.constant 0 : i32
    %c0_i32_0 = arith.constant 0 : i32
    return %arg0, %c0_i32 : i32, i32
  }
}

</mosaic_0001>

<llo_original>
// kernel: tpu_custom_call.1
$region0: #{tpu_custom_call.1}
  #allocation0 [shape = 'u32[]', space=smem, size = 0x4, offset = 0x4, fixed_abs, tag = 'smem constant byte address 0x4 - core index']
  #allocation1 [shape = 'u32[72,128]{1,0:T(1,128)}', space=vmem, size = 0x9000, scoped, tag = 'internal scratch']
  %s0 = inlined_call_operand.hbm [shape: bf16[8,16], index: 0, kind: input, shape index: {}]
  %s1 = inlined_call_operand.hbm [shape: bf16[8,8], index: 1, kind: input, shape index: {}]
  %s2 = inlined_call_operand.hbm [shape: bf16[8,16], index: 2, kind: input, shape index: {}]
  %s3 = inlined_call_operand.vmem [shape: f32[8,1], index: 3, kind: input, shape index: {}]
  %s4 = inlined_call_operand.vmem [shape: bf16[16,32], index: 4, kind: input, shape index: {}]
  %s5 = inlined_call_operand.hbm [shape: bf16[8,32], index: 5, kind: input, shape index: {}]
  %s6 = inlined_call_operand.hbm [shape: bf16[16,32], index: 6, kind: input, shape index: {}]
  %s7 = inlined_call_operand.vmem [shape: f32[1,32], index: 7, kind: input, shape index: {}]
  %s8 = inlined_call_operand.vmem [shape: f32[1,32], index: 8, kind: input, shape index: {}]
  %s9 = inlined_call_operand.vmem [shape: bf16[32,32], index: 9, kind: input, shape index: {}]
  %s10 = inlined_call_operand.vmem [shape: f32[1,32], index: 10, kind: input, shape index: {}]
  %s11 = inlined_call_operand.vmem [shape: bf16[32,2], index: 11, kind: input, shape index: {}]
  %s12 = inlined_call_operand.vmem [shape: f32[1,2], index: 12, kind: input, shape index: {}]
  %s13 = inlined_call_operand.vmem [shape: f32[8,2], index: 13, kind: output, shape index: {}]
  %s14 = sld [smem:[#allocation0]]
  $region82: #{tpu_custom_call.1} parent=0
    _
  %s16 = ssub.s32 1, %s14
  %s17 = scalar_select 0, %s16, %s14
  $region1: #{tpu_custom_call.1} parent=0
    #allocation2 [shape = 'u8[2048]{0}', space=vmem, size = 0x800, scoped, tag = 'input window, operand 0, single buffered']
    #allocation3 [shape = 's32[1]{0}', space=sflag, size = 0x4, scoped, tag = 'scoped memory for tpu_custom_call.1']
    #allocation4 [shape = 'u8[2048]{0}', space=vmem, size = 0x800, scoped, tag = 'input window, operand 1, single buffered']
    #allocation5 [shape = 's32[1]{0}', space=sflag, size = 0x4, scoped, tag = 'scoped memory for tpu_custom_call.1']
    #allocation6 [shape = 'u8[2048]{0}', space=vmem, size = 0x800, scoped, tag = 'input window, operand 2, single buffered']
    #allocation7 [shape = 'u8[2048]{0}', space=vmem, size = 0x800, scoped, tag = 'input window, operand 5, single buffered']
    #allocation8 [shape = 's32[1]{0}', space=sflag, size = 0x4, scoped, tag = 'scoped memory for tpu_custom_call.1']
    #allocation9 [shape = 'u8[4096]{0}', space=vmem, size = 0x1000, scoped, tag = 'input window, operand 6, single buffered']
    %18 = vsyncpa [#allocation3], 0
    %19 = vsyncpa [#allocation5], 0
    %20 = vsyncpa [#allocation8], 0
    // Predicated region
    $region2: #{tpu_custom_call.1} parent=1 // pred_check
      _
    $region3: #{tpu_custom_call.1} parent=1 // pred_check_branch
      %22 = sbr.rel (0) target = $region5
    $region4: #{tpu_custom_call.1} parent=1 // pred_region
      %24 = vsyncadd [#allocation3], 0
      %s26 = sshll.u32 %s0, 4
      %s27 = int_to_ptr.hbm [resolvable:$true] %s26
      %s28 = sshll.u32 [#allocation2], 4
      %s29 = int_to_ptr.vmem [resolvable:$true] %s28
      %31 = dma.hbm_to_vmem [thread:$0]  %s27, 64, %s29, [#allocation3]
    $region5: #{tpu_custom_call.1} parent=1 // pred_fallthru
      _
    // Predicated region
    $region6: #{tpu_custom_call.1} parent=1 // pred_check
      _
    $region7: #{tpu_custom_call.1} parent=1 // pred_check_branch
      %33 = sbr.rel (0) target = $region9
    $region8: #{tpu_custom_call.1} parent=1 // pred_region
      %35 = vsyncadd [#allocation5], 0
      %s37 = sshll.u32 %s1, 4
      %s38 = int_to_ptr.hbm [resolvable:$true] %s37
      %s39 = sshll.u32 [#allocation4], 4
      %s40 = int_to_ptr.vmem [resolvable:$true] %s39
      %42 = dma.hbm_to_vmem [thread:$0]  %s38, 64, %s40, [#allocation5]
    $region9: #{tpu_custom_call.1} parent=1 // pred_fallthru
      _
    // Predicated region
    $region10: #{tpu_custom_call.1} parent=1 // pred_check
      _
    $region11: #{tpu_custom_call.1} parent=1 // pred_check_branch
      %44 = sbr.rel (0) target = $region13
    $region12: #{tpu_custom_call.1} parent=1 // pred_region
      %46 = vsyncadd [#allocation5], 0
      %s48 = sshll.u32 %s2, 4
      %s49 = int_to_ptr.hbm [resolvable:$true] %s48
      %s50 = sshll.u32 [#allocation6], 4
      %s51 = int_to_ptr.vmem [resolvable:$true] %s50
      %53 = dma.hbm_to_vmem [thread:$0]  %s49, 64, %s51, [#allocation5]
    $region13: #{tpu_custom_call.1} parent=1 // pred_fallthru
      _
    // Predicated region
    $region14: #{tpu_custom_call.1} parent=1 // pred_check
      _
    $region15: #{tpu_custom_call.1} parent=1 // pred_check_branch
      %55 = sbr.rel (0) target = $region17
    $region16: #{tpu_custom_call.1} parent=1 // pred_region
      _
    $region17: #{tpu_custom_call.1} parent=1 // pred_fallthru
      _
    // Predicated region
    $region18: #{tpu_custom_call.1} parent=1 // pred_check
      _
    $region19: #{tpu_custom_call.1} parent=1 // pred_check_branch
      %57 = sbr.rel (0) target = $region21
    $region20: #{tpu_custom_call.1} parent=1 // pred_region
      _
    $region21: #{tpu_custom_call.1} parent=1 // pred_fallthru
      _
    // Predicated region
    $region22: #{tpu_custom_call.1} parent=1 // pred_check
      _
    $region23: #{tpu_custom_call.1} parent=1 // pred_check_branch
      %59 = sbr.rel (0) target = $region25
    $region24: #{tpu_custom_call.1} parent=1 // pred_region
      %61 = vsyncadd [#allocation8], 0
      %s63 = sshll.u32 %s5, 4
      %s64 = int_to_ptr.hbm [resolvable:$true] %s63
      %s65 = sshll.u32 [#allocation7], 4
      %s66 = int_to_ptr.vmem [resolvable:$true] %s65
      %68 = dma.hbm_to_vmem [thread:$0]  %s64, 64, %s66, [#allocation8]
    $region25: #{tpu_custom_call.1} parent=1 // pred_fallthru
      _
    // Predicated region
    $region26: #{tpu_custom_call.1} parent=1 // pred_check
      _
    $region27: #{tpu_custom_call.1} parent=1 // pred_check_branch
      %70 = sbr.rel (0) target = $region29
    $region28: #{tpu_custom_call.1} parent=1 // pred_region
      %72 = vsyncadd [#allocation8], 0
      %s73 = sshll.u32 %s6, 4
      %s74 = int_to_ptr.hbm [resolvable:$true] %s73
      %s75 = sshll.u32 [#allocation9], 4
      %s76 = int_to_ptr.vmem [resolvable:$true] %s75
      %81 = dma.hbm_to_vmem [thread:$0]  %s74, 128, %s76, [#allocation8], 64, 64, 4
    $region29: #{tpu_custom_call.1} parent=1 // pred_fallthru
      _
    // Predicated region
    $region30: #{tpu_custom_call.1} parent=1 // pred_check
      _
    $region31: #{tpu_custom_call.1} parent=1 // pred_check_branch
      %83 = sbr.rel (0) target = $region33
    $region32: #{tpu_custom_call.1} parent=1 // pred_region
      _
    $region33: #{tpu_custom_call.1} parent=1 // pred_fallthru
      _
    // Predicated region
    $region34: #{tpu_custom_call.1} parent=1 // pred_check
      _
    $region35: #{tpu_custom_call.1} parent=1 // pred_check_branch
      %85 = sbr.rel (0) target = $region37
    $region36: #{tpu_custom_call.1} parent=1 // pred_region
      _
    $region37: #{tpu_custom_call.1} parent=1 // pred_fallthru
      _
    // Predicated region
    $region38: #{tpu_custom_call.1} parent=1 // pred_check
      _
    $region39: #{tpu_custom_call.1} parent=1 // pred_check_branch
      %87 = sbr.rel (0) target = $region41
    $region40: #{tpu_custom_call.1} parent=1 // pred_region
      _
    $region41: #{tpu_custom_call.1} parent=1 // pred_fallthru
      _
    // Predicated region
    $region42: #{tpu_custom_call.1} parent=1 // pred_check
      _
    $region43: #{tpu_custom_call.1} parent=1 // pred_check_branch
      %89 = sbr.rel (0) target = $region45
    $region44: #{tpu_custom_call.1} parent=1 // pred_region
      _
    $region45: #{tpu_custom_call.1} parent=1 // pred_fallthru
      _
    // Predicated region
    $region46: #{tpu_custom_call.1} parent=1 // pred_check
      _
    $region47: #{tpu_custom_call.1} parent=1 // pred_check_branch
      %91 = sbr.rel (0) target = $region49
    $region48: #{tpu_custom_call.1} parent=1 // pred_region
      _
    $region49: #{tpu_custom_call.1} parent=1 // pred_fallthru
      _
    // Predicated region
    $region50: #{tpu_custom_call.1} parent=1 // pred_check
      _
    $region51: #{tpu_custom_call.1} parent=1 // pred_check_branch
      %93 = sbr.rel (0) target = $region53
    $region52: #{tpu_custom_call.1} parent=1 // pred_region
      _
    $region53: #{tpu_custom_call.1} parent=1 // pred_fallthru
      _
    // Predicated region
    $region54: #{tpu_custom_call.1} parent=1 // pred_check
      _
    $region55: #{tpu_custom_call.1} parent=1 // pred_check_branch
      %95 = sbr.rel (0) target = $region57
    $region56: #{tpu_custom_call.1} parent=1 // pred_region
      %97 = dma.done [#allocation3], 64
    $region57: #{tpu_custom_call.1} parent=1 // pred_fallthru
      _
    // Predicated region
    $region58: #{tpu_custom_call.1} parent=1 // pred_check
      _
    $region59: #{tpu_custom_call.1} parent=1 // pred_check_branch
      %99 = sbr.rel (0) target = $region61
    $region60: #{tpu_custom_call.1} parent=1 // pred_region
      %101 = dma.done [#allocation5], 64
    $region61: #{tpu_custom_call.1} parent=1 // pred_fallthru
      _
    // Predicated region
    $region62: #{tpu_custom_call.1} parent=1 // pred_check
      _
    $region63: #{tpu_custom_call.1} parent=1 // pred_check_branch
      %103 = sbr.rel (0) target = $region65
    $region64: #{tpu_custom_call.1} parent=1 // pred_region
      %105 = dma.done [#allocation5], 64
    $region65: #{tpu_custom_call.1} parent=1 // pred_fallthru
      _
    // Predicated region
    $region66: #{tpu_custom_call.1} parent=1 // pred_check
      _
    $region67: #{tpu_custom_call.1} parent=1 // pred_check_branch
      %107 = sbr.rel (0) target = $region69
    $region68: #{tpu_custom_call.1} parent=1 // pred_region
      %109 = dma.done [#allocation8], 64
    $region69: #{tpu_custom_call.1} parent=1 // pred_fallthru
      _
    // Predicated region
    $region70: #{tpu_custom_call.1} parent=1 // pred_check
      _
    $region71: #{tpu_custom_call.1} parent=1 // pred_check_branch
      %111 = sbr.rel (0) target = $region73
    $region72: #{tpu_custom_call.1} parent=1 // pred_region
      %113 = dma.done [#allocation8], 128
    $region73: #{tpu_custom_call.1} parent=1 // pred_fallthru
      _
    %v115 = vld [vmem:[#allocation2] sm:$0xf]
    %v116 = vld [vmem:[%s4] sm:$0xf]
    %v117 = vld [vmem:[%s4 + $0x4] sm:$0xf]
    %v118 = vld [vmem:[#allocation4] sm:$0xf]
    %v119 = vld [vmem:[#allocation7] sm:$0xf]
    %vm120 = vcmask 64512
    %v122 = vsel %vm120, %v118, 0
    %vm124 = vcmask 1043456
    %v126 = vsel %vm124, %v119, 0
    %128 = vmatpush.bf16.msra.mxu0 0
    %129 = vmatpush.bf16.msra.mxu0 0
    %130 = vmatpush.bf16.msra.mxu0 0
    %131 = vmatpush.bf16.msra.mxu0 0
    %132 = vmatpush.bf16.msra.mxu0 0
    %133 = vmatpush.bf16.msra.mxu0 0
    %134 = vmatpush.bf16.msra.mxu0 0
    %135 = vmatpush.bf16.msra.mxu0 %v126
    %136 = vmatmul.bf16.gmra.mxu0 %v122
    %v137 = vpop.f32.mrf.mxu0
    %v138 = vadd.f32 0.0, %v137
    %v139 = vpop.f32.mrf.mxu0
    %140 = vdwg.mxu0
    %v143 = vunpack.c.l.b16 %v116
    %v144 = vunpack.c.l.b16 %v117
    %v145 = vpack.c.b16 %v144, %v143
    %vm147 = vcmask 130048
    %v149 = vsel %vm147, %v115, 0
    %151 = vmatpush.bf16.msra.mxu0 0
    %152 = vmatpush.bf16.msra.mxu0 0
    %153 = vmatpush.bf16.msra.mxu0 0
    %154 = vmatpush.bf16.msra.mxu0 0
    %155 = vmatpush.bf16.msra.mxu0 0
    %156 = vmatpush.bf16.msra.mxu0 0
    %157 = vmatpush.bf16.msra.mxu0 0
    %158 = vmatpush.bf16.msra.mxu0 %v145
    %159 = vmatmul.bf16.gmra.mxu0 %v149
    %v160 = vpop.f32.mrf.mxu0
    %v161 = vadd.f32 %v138, %v160
    %v162 = vpop.f32.mrf.mxu0
    %163 = vdwg.mxu0
    %v164 = vld [vmem:[#allocation6] sm:$0xf]
    %v165 = vld [vmem:[#allocation9] sm:$0xf]
    %v166 = vld [vmem:[#allocation9 + $0x4] sm:$0xf]
    %v169 = vunpack.c.l.b16 %v165
    %v170 = vunpack.c.l.b16 %v166
    %v171 = vpack.c.b16 %v170, %v169
    %v174 = vsel %vm147, %v164, 0
    %176 = vmatpush.bf16.msra.mxu0 0
    %177 = vmatpush.bf16.msra.mxu0 0
    %178 = vmatpush.bf16.msra.mxu0 0
    %179 = vmatpush.bf16.msra.mxu0 0
    %180 = vmatpush.bf16.msra.mxu0 0
    %181 = vmatpush.bf16.msra.mxu0 0
    %182 = vmatpush.bf16.msra.mxu0 0
    %183 = vmatpush.bf16.msra.mxu0 %v171
    %184 = vmatmul.bf16.gmra.mxu0 %v174
    %v185 = vpop.f32.mrf.mxu0
    %v186 = vadd.f32 0.0, %v185
    %v187 = vpop.f32.mrf.mxu0
    %188 = vdwg.mxu0
    %v189 = vadd.f32 %v161, %v186
    %v190 = vld [vmem:[%s3] sm:$0xff]
    %v191 = vld [vmem:[%s7] sm:$0x1]
    %193 = vset.pattern.permute.xlu0 0
    %194 = vperm.xlu0 %193, %v190
    %v195 = vpop.permute.xlu0 %194
    %v198 = vperm.slane %v191, 0
    %v200 = vmul.f32 %v195, %v198
    %v201 = vadd.f32 %v189, %v200
    %v202 = vld [vmem:[%s8] sm:$0x1]
    %v204 = vperm.slane %v202, 0
    %v206 = vadd.f32 %v201, %v204
    %v207 = vmax.f32 %v206, 0.0
    %v208 = vpack.c.bf16 %v207, %v207
    %v209 = vld [vmem:[%s9] sm:$0xf]
    %v210 = vld [vmem:[%s9 + $0x4] sm:$0xf]
    %v211 = vld [vmem:[%s9 + $0x8] sm:$0xf]
    %v212 = vld [vmem:[%s9 + $0xc] sm:$0xf]
    %v213 = vld [vmem:[%s10] sm:$0x1]
    %v215 = vperm.slane %v213, 0
    %v221 = vunpack.c.l.b16 %v209
    %v222 = vunpack.c.l.b16 %v210
    %v223 = vunpack.c.l.b16 %v211
    %v224 = vunpack.c.l.b16 %v212
    %v225 = vpack.c.b16 %v222, %v221
    %v226 = vpack.c.b16 %v224, %v223
    %vm229 = vcmask 261120
    %v231 = vsel %vm229, %v208, 0
    %233 = vmatpush.bf16.msra.mxu0 0
    %234 = vmatpush.bf16.msra.mxu0 0
    %235 = vmatpush.bf16.msra.mxu0 0
    %236 = vmatpush.bf16.msra.mxu0 0
    %237 = vmatpush.bf16.msra.mxu0 0
    %238 = vmatpush.bf16.msra.mxu0 0
    %239 = vmatpush.bf16.msra.mxu0 %v226
    %240 = vmatpush.bf16.msra.mxu0 %v225
    %241 = vmatmul.bf16.gmra.mxu0 %v231
    %v242 = vpop.f32.mrf.mxu0
    %v243 = vadd.f32 %v215, %v242
    %v244 = vpop.f32.mrf.mxu0
    %245 = vdwg.mxu0
    %v246 = vmax.f32 %v243, 0.0
    %v247 = vpack.c.bf16 %v246, %v246
    %v248 = vld [vmem:[%s11] sm:$0xf]
    %v249 = vld [vmem:[%s11 + $0x4] sm:$0xf]
    %v250 = vld [vmem:[%s11 + $0x8] sm:$0xf]
    %v251 = vld [vmem:[%s11 + $0xc] sm:$0xf]
    %v252 = vld [vmem:[%s12] sm:$0x1]
    %v254 = vperm.slane %v252, 0
    %v260 = vunpack.c.l.b16 %v248
    %v261 = vunpack.c.l.b16 %v249
    %v262 = vunpack.c.l.b16 %v250
    %v263 = vunpack.c.l.b16 %v251
    %v264 = vpack.c.b16 %v261, %v260
    %v265 = vpack.c.b16 %v263, %v262
    %v269 = vsel %vm229, %v247, 0
    %271 = vmatpush.bf16.msra.mxu0 0
    %272 = vmatpush.bf16.msra.mxu0 0
    %273 = vmatpush.bf16.msra.mxu0 0
    %274 = vmatpush.bf16.msra.mxu0 0
    %275 = vmatpush.bf16.msra.mxu0 0
    %276 = vmatpush.bf16.msra.mxu0 0
    %277 = vmatpush.bf16.msra.mxu0 %v265
    %278 = vmatpush.bf16.msra.mxu0 %v264
    %279 = vmatmul.bf16.gmra.mxu0 %v269
    %v280 = vpop.f32.mrf.mxu0
    %v281 = vadd.f32 %v254, %v280
    %v282 = vpop.f32.mrf.mxu0
    %283 = vdwg.mxu0
    %vm284 = vcmask 15360
    %285 = vst.msk [vmem:[%s13] sm:$0xff] %vm284, %v281
    // Predicated region
    $region74: #{tpu_custom_call.1} parent=1 // pred_check
      _
    $region75: #{tpu_custom_call.1} parent=1 // pred_check_branch
      %287 = sbr.rel (0) target = $region77
    $region76: #{tpu_custom_call.1} parent=1 // pred_region
      _
    $region77: #{tpu_custom_call.1} parent=1 // pred_fallthru
      _
    // Predicated region
    $region78: #{tpu_custom_call.1} parent=1 // pred_check
      _
    $region79: #{tpu_custom_call.1} parent=1 // pred_check_branch
      %289 = sbr.rel (0) target = $region81
    $region80: #{tpu_custom_call.1} parent=1 // pred_region
      _
    $region81: #{tpu_custom_call.1} parent=1 // pred_fallthru
      _
    %290 = vsyncpa [#allocation3], 1
    %291 = vsyncpa [#allocation5], 1
    %292 = vsyncpa [#allocation8], 1

</llo_original>
